<compile_context>
chip_gen: v5e
topology: v5e:2x2
jax: 0.10.0
libtpu: 0.0.40
codegen_flags: <defaults>
</compile_context>

<pallas_src>
import math
from functools import partial

import jax
import jax.numpy as jnp
from jax import lax
from jax.experimental import pallas as pl
from jax.experimental.pallas import tpu as pltpu


# ---------------- Pallas kernel ----------------

def _mha_kernel(x_q_ref, x_kv_ref, *rest, n_heads, mask_mode):
    """One (batch, q-tile) grid step of SimpleAttention forward.

    x_q_ref : [1, tq, D]   rows of x this step computes queries for
    x_kv_ref: [1, S,  D]   full sequence (keys/values)
    bias_ref: [1, tq, S]   (only when mask_mode == "dense") additive f32 bias
    wq_ref  : [D, D]       w_q.T, pre-scaled by 1/sqrt(d_k)
    bq_ref  : [1, D]       b_q * 1/sqrt(d_k)                 (f32)
    wkv_ref : [D, 2D]      [w_k.T | w_v.T] fused
    bkv_ref : [1, 2D]      [b_k | b_v]                       (f32)
    wo_ref  : [D, D]       w_o.T
    bo_ref  : [1, D]       b_o                               (f32)
    o_ref   : [1, tq, D]
    """
    if mask_mode == "dense":
        bias_ref, wq_ref, bq_ref, wkv_ref, bkv_ref, wo_ref, bo_ref, o_ref = rest
    else:
        wq_ref, bq_ref, wkv_ref, bkv_ref, wo_ref, bo_ref, o_ref = rest

    tq, D = o_ref.shape[1], o_ref.shape[2]
    S = x_kv_ref.shape[1]
    d_k = D // n_heads
    dt = wq_ref.dtype          # MXU operand dtype (f32 or bf16); accumulation is f32

    # --- dense projections (N = D / 2D fills the MXU; the 1/sqrt(d_k) scale is
    # --- already folded into wq/bq on the host) --------------------------------
    q_all = jnp.dot(x_q_ref[0], wq_ref[...],
                    preferred_element_type=jnp.float32) + bq_ref[...]      # [tq, D]
    kv_all = jnp.dot(x_kv_ref[0], wkv_ref[...],
                     preferred_element_type=jnp.float32) + bkv_ref[...]    # [S, 2D]

    # --- additive mask bias, computed ONCE per grid step (shared by all heads) --
    if mask_mode == "dense":
        bias = bias_ref[0]                                                 # [tq, S]
    elif mask_mode == "causal":
        row = lax.broadcasted_iota(jnp.int32, (tq, S), 0) + pl.program_id(1) * tq
        col = lax.broadcasted_iota(jnp.int32, (tq, S), 1)
        bias = jnp.where(col <= row, 0.0, -1e9).astype(jnp.float32)
    else:
        bias = None

    # --- per-head attention.  Static loop over a handful of heads; each head's
    # --- temporaries are consumed before the next head's are produced.
    # TODO(synk): for S >~ 1K restructure as a flash-style kv-tiled online softmax
    #             (running max/sum/acc in VMEM scratch) instead of [tq,S] scores.
    heads = []
    for h in range(n_heads):
        q_h = q_all[:, h * d_k:(h + 1) * d_k].astype(dt)                   # [tq, d_k]
        k_h = kv_all[:, h * d_k:(h + 1) * d_k].astype(dt)                  # [S,  d_k]
        v_h = kv_all[:, D + h * d_k:D + (h + 1) * d_k].astype(dt)          # [S,  d_k]

        s = lax.dot_general(q_h, k_h, (((1,), (1,)), ((), ())),
                            preferred_element_type=jnp.float32)            # [tq, S]
        if bias is not None:
            s = s + bias

        # numerically-stable softmax over keys, kept in f32 on all generations
        m = jnp.max(s, axis=-1, keepdims=True)
        e = jnp.exp(s - m)
        p = e * pl.reciprocal(jnp.sum(e, axis=-1, keepdims=True), approx=True)
        # dropout(attn_weights): eval-mode identity.

        heads.append(jnp.dot(p.astype(dt), v_h,
                             preferred_element_type=jnp.float32))          # [tq, d_k]

    # --- fused output projection on the lane-dense concat of all heads ---------
    attn = jnp.concatenate(heads, axis=-1)                                 # [tq, D]
    out = jnp.dot(attn.astype(dt), wo_ref[...],
                  preferred_element_type=jnp.float32) + bo_ref[...]        # [tq, D]
    o_ref[0] = out.astype(o_ref.dtype)


# ---------------- Host wrapper ----------------

def simple_attention(x, params, mask=None, *, n_heads=8, causal=False,
                     block_q=None, operand_dtype=jnp.float32):
    """Forward pass of SimpleAttention.

    x: [B, S, D].  params: torch-layout ([out, in]) Linear weights/biases.
    mask: optional [S, S] / [B, S, S]; entries == 0 are masked (torch masked_fill).
    causal=True (with mask=None): causal mask generated in-kernel (zero mask DMA).
    block_q: query rows per grid step (None => whole sequence in one step).
    operand_dtype: matmul operand dtype (jnp.bfloat16 on v6e/v7x); f32 accumulate.
    """
    B, S, D = x.shape
    assert D % n_heads == 0, "d_model must be divisible by n_heads"
    d_k = D // n_heads
    f32 = jnp.float32

    tq = S if block_q is None else min(int(block_q), S)
    assert S % tq == 0, "seq_len must be divisible by block_q"
    nq = S // tq

    if mask is not None:
        mask_mode = "dense"
    elif causal:
        mask_mode = "causal"
    else:
        mask_mode = "none"

    # torch Linear computes y = x @ W.T + b  ->  pass W.T for right-multiplication.
    scale = 1.0 / math.sqrt(d_k)
    wq = (params["w_q"].astype(f32).T * scale).astype(operand_dtype)       # [D, D]
    bq = (params["b_q"].astype(f32) * scale).reshape(1, D)                 # f32
    wkv = jnp.concatenate([params["w_k"].astype(f32).T,
                           params["w_v"].astype(f32).T],
                          axis=1).astype(operand_dtype)                    # [D, 2D]
    bkv = jnp.concatenate([params["b_k"].astype(f32),
                           params["b_v"].astype(f32)]).reshape(1, 2 * D)   # f32
    wo = params["w_o"].astype(f32).T.astype(operand_dtype)                 # [D, D]
    bo = params["b_o"].astype(f32).reshape(1, D)                           # f32
    x_op = x.astype(operand_dtype)

    in_specs = [
        pl.BlockSpec((1, tq, D), lambda b, qi: (b, qi, 0)),    # x rows for Q
        pl.BlockSpec((1, S, D), lambda b, qi: (b, 0, 0)),      # full x for K/V
    ]
    args = [x_op, x_op]
    if mask_mode == "dense":
        # Compare/select hoisted out of the kernel: ship an additive f32 bias.
        # TODO(synk): ship as int8/bool + in-kernel where() to cut mask DMA 4x.
        bias = jnp.where(jnp.broadcast_to(mask, (B, S, S)) == 0,
                         jnp.float32(-1e9), jnp.float32(0.0))
        in_specs.append(pl.BlockSpec((1, tq, S), lambda b, qi: (b, qi, 0)))
        args.append(bias)
    # Grid-invariant weights/biases (constant index_map => fetched once, stays in VMEM).
    # TODO(synk): at production D, single-buffer these (pipeline_mode=pl.Buffered(1))
    #             or DMA them once into scratch to halve weight VMEM (v7x: 64 MiB).
    in_specs += [
        pl.BlockSpec((D, D), lambda b, qi: (0, 0)),            # wq (pre-scaled)
        pl.BlockSpec((1, D), lambda b, qi: (0, 0)),            # bq (pre-scaled)
        pl.BlockSpec((D, 2 * D), lambda b, qi: (0, 0)),        # wkv
        pl.BlockSpec((1, 2 * D), lambda b, qi: (0, 0)),        # bkv
        pl.BlockSpec((D, D), lambda b, qi: (0, 0)),            # wo
        pl.BlockSpec((1, D), lambda b, qi: (0, 0)),            # bo
    ]
    args += [wq, bq, wkv, bkv, wo, bo]

    # Rough VMEM budget: double-buffered blocks + f32 intermediates, clamped so the
    # request is safe on every generation (v7x physical VMEM is 64 MiB).
    ob = jnp.dtype(operand_dtype).itemsize
    blocks = ((tq * D + S * D) * ob
              + (tq * S * 4 if mask_mode == "dense" else 0)
              + 4 * D * D * ob + 4 * D * 4
              + tq * D * 4)
    interm = 4 * (tq * D + S * 2 * D + tq * S + tq * D)   # q_all, kv_all, scores, attn
    vmem_limit = int(max(32 << 20, min(64 << 20, 2 * blocks + interm + (4 << 20))))

    flops = B * (2 * S * D * D            # Q projection
                 + nq * 4 * S * D * D     # fused K/V projection (per q-tile)
                 + 4 * S * S * D          # scores + attn @ V across heads
                 + 2 * S * D * D)         # output projection
    transcendentals = B * n_heads * S * S
    bytes_accessed = (B * (nq + 1) * S * D * ob
                      + (B * S * S * 4 if mask_mode == "dense" else 0)
                      + 4 * D * D * ob + 4 * D * 4
                      + B * S * D * 4)

    kernel = partial(_mha_kernel, n_heads=n_heads, mask_mode=mask_mode)
    return pl.pallas_call(
        kernel,
        out_shape=jax.ShapeDtypeStruct((B, S, D), jnp.float32),
        grid=(B, nq),
        in_specs=in_specs,
        out_specs=pl.BlockSpec((1, tq, D), lambda b, qi: (b, qi, 0)),
        compiler_params=pltpu.CompilerParams(
            dimension_semantics=("parallel", "parallel"),
            vmem_limit_bytes=vmem_limit),
        cost_estimate=pl.CostEstimate(flops=flops,
                                      transcendentals=transcendentals,
                                      bytes_accessed=bytes_accessed),
    )(*args)


# ---------------- Pure-JAX reference (correctness check) ----------------

def simple_attention_ref(x, params, mask=None, n_heads=8):
    B, S, D = x.shape
    d_k = D // n_heads

    def lin(t, w, b):
        return t @ w.T + b

    q = lin(x, params["w_q"], params["b_q"]).reshape(B, S, n_heads, d_k).transpose(0, 2, 1, 3)
    k = lin(x, params["w_k"], params["b_k"]).reshape(B, S, n_heads, d_k).transpose(0, 2, 1, 3)
    v = lin(x, params["w_v"], params["b_v"]).reshape(B, S, n_heads, d_k).transpose(0, 2, 1, 3)
    s = jnp.einsum("bhqd,bhkd->bhqk", q, k) / math.sqrt(d_k)
    if mask is not None:
        s = jnp.where(mask[:, None, :, :] == 0, -1e9, s)
    p = jax.nn.softmax(s, axis=-1)
    o = jnp.einsum("bhqk,bhkd->bhqd", p, v).transpose(0, 2, 1, 3).reshape(B, S, D)
    return lin(o, params["w_o"], params["b_o"])


# ---------------- Deterministic parameter init (torch nn.Linear style) ----------------

def init_params(key, d_model):
    keys = jax.random.split(key, 8)
    bound = 1.0 / math.sqrt(d_model)

    def lin_p(kw, kb):
        w = jax.random.uniform(kw, (d_model, d_model), jnp.float32, -bound, bound)
        b = jax.random.uniform(kb, (d_model,), jnp.float32, -bound, bound)
        return w, b

    w_q, b_q = lin_p(keys[0], keys[1])
    w_k, b_k = lin_p(keys[2], keys[3])
    w_v, b_v = lin_p(keys[4], keys[5])
    w_o, b_o = lin_p(keys[6], keys[7])
    return {"w_q": w_q, "b_q": b_q, "w_k": w_k, "b_k": b_k,
            "w_v": w_v, "b_v": b_v, "w_o": w_o, "b_o": b_o}


if __name__ == "__main__":
    B, S, d_model, n_heads = 2, 8, 32, 8
    key = jax.random.PRNGKey(0)
    kx, kp = jax.random.split(key)
    x = jax.random.normal(kx, (B, S, d_model), jnp.float32)
    params = init_params(kp, d_model)

    fwd = jax.jit(simple_attention,
                  static_argnames=("n_heads", "causal", "block_q", "operand_dtype"))

    # 1) no-mask variant: no [B,S,S] mask tensor is materialized or DMA'd at all.
    out = jax.block_until_ready(fwd(x, params, n_heads=n_heads))
    ref = simple_attention_ref(x, params, n_heads=n_heads)
    assert out.shape == (B, S, d_model) and out.dtype == jnp.float32
    assert jnp.allclose(out, ref, atol=2e-3, rtol=2e-3)

    # 2) dense user-supplied mask (torch masked_fill semantics, hoisted to f32 bias).
    causal_mask = jnp.broadcast_to(jnp.tril(jnp.ones((S, S), jnp.int32)), (B, S, S))
    out_m = jax.block_until_ready(fwd(x, params, causal_mask, n_heads=n_heads))
    ref_m = simple_attention_ref(x, params, causal_mask, n_heads=n_heads)
    assert jnp.allclose(out_m, ref_m, atol=2e-3, rtol=2e-3)

    # 3) in-kernel causal mask (broadcasted_iota) + query-tile grid axis (grid=(B,2)).
    S2 = 16
    x2 = jax.random.normal(jax.random.PRNGKey(1), (B, S2, d_model), jnp.float32)
    mask2 = jnp.broadcast_to(jnp.tril(jnp.ones((S2, S2), jnp.int32)), (B, S2, S2))
    out_c = jax.block_until_ready(
        fwd(x2, params, n_heads=n_heads, causal=True, block_q=8))
    ref_c = simple_attention_ref(x2, params, mask2, n_heads=n_heads)
    assert jnp.allclose(out_c, ref_c, atol=2e-3, rtol=2e-3)

    # 4) bf16 matmul operands (v6e/v7x path), f32 MXU accumulation + f32 softmax.
    out_bf = jax.block_until_ready(
        fwd(x, params, n_heads=n_heads, operand_dtype=jnp.bfloat16))
    assert jnp.allclose(out_bf, ref, atol=5e-2, rtol=5e-2)

    print("KERNEL_OK")
</pallas_src>

<mosaic_0001>
module attributes {stable_mosaic.version = 11 : i64} {
  func.func @_mha_kernel(%arg0: i32, %arg1: i32, %arg2: memref<1x8x32xf32, #tpu.memory_space<vmem>>, %arg3: memref<1x8x32xf32, #tpu.memory_space<vmem>>, %arg4: memref<32x32xf32, #tpu.memory_space<vmem>>, %arg5: memref<1x32xf32, #tpu.memory_space<vmem>>, %arg6: memref<32x64xf32, #tpu.memory_space<vmem>>, %arg7: memref<1x64xf32, #tpu.memory_space<vmem>>, %arg8: memref<32x32xf32, #tpu.memory_space<vmem>>, %arg9: memref<1x32xf32, #tpu.memory_space<vmem>>, %arg10: memref<1x8x32xf32, #tpu.memory_space<vmem>>) attributes {dimension_semantics = [#tpu.dimension_semantics<parallel>, #tpu.dimension_semantics<parallel>], iteration_bounds = array<i64: 2, 1>, scalar_prefetch = 0 : i64, scratch_operands = 0 : i64, tpu.core_type = #tpu.core_type<tc>, window_params = [{transform_indices = @transform_0, window_bounds = array<i64: 1, 8, 32>}, {transform_indices = @transform_1, window_bounds = array<i64: 1, 8, 32>}, {pipeline_mode = #tpu.pipeline_mode<synchronous>, transform_indices = @transform_2, window_bounds = array<i64: 32, 32>}, {pipeline_mode = #tpu.pipeline_mode<synchronous>, transform_indices = @transform_3, window_bounds = array<i64: 1, 32>}, {pipeline_mode = #tpu.pipeline_mode<synchronous>, transform_indices = @transform_4, window_bounds = array<i64: 32, 64>}, {pipeline_mode = #tpu.pipeline_mode<synchronous>, transform_indices = @transform_5, window_bounds = array<i64: 1, 64>}, {pipeline_mode = #tpu.pipeline_mode<synchronous>, transform_indices = @transform_6, window_bounds = array<i64: 32, 32>}, {pipeline_mode = #tpu.pipeline_mode<synchronous>, transform_indices = @transform_7, window_bounds = array<i64: 1, 32>}, {transform_indices = @transform_8, window_bounds = array<i64: 1, 8, 32>}]} {
    %c0 = arith.constant 0 : index
    %c0_0 = arith.constant 0 : index
    %c0_1 = arith.constant 0 : index
    %0 = vector.load %arg2[%c0, %c0_0, %c0_1] : memref<1x8x32xf32, #tpu.memory_space<vmem>>, vector<1x8x32xf32>
    %1 = vector.shape_cast %0 : vector<1x8x32xf32> to vector<8x32xf32>
    %c0_2 = arith.constant 0 : index
    %c0_3 = arith.constant 0 : index
    %2 = vector.load %arg4[%c0_2, %c0_3] : memref<32x32xf32, #tpu.memory_space<vmem>>, vector<32x32xf32>
    %cst = arith.constant dense<0.000000e+00> : vector<8x32xf32>
    %3 = tpu.matmul %1, %2, %cst {dimension_numbers = #tpu.dot_dimension_numbers<[1], [0], [0], [1], [0, 0, 1, 1], [], []>} : vector<8x32xf32>, vector<32x32xf32>, vector<8x32xf32> -> vector<8x32xf32>
    %c0_4 = arith.constant 0 : index
    %c0_5 = arith.constant 0 : index
    %4 = vector.load %arg5[%c0_4, %c0_5] : memref<1x32xf32, #tpu.memory_space<vmem>>, vector<1x32xf32>
    %5 = vector.broadcast %4 : vector<1x32xf32> to vector<8x32xf32>
    %6 = arith.addf %3, %5 : vector<8x32xf32>
    %c0_6 = arith.constant 0 : index
    %c0_7 = arith.constant 0 : index
    %c0_8 = arith.constant 0 : index
    %7 = vector.load %arg3[%c0_6, %c0_7, %c0_8] : memref<1x8x32xf32, #tpu.memory_space<vmem>>, vector<1x8x32xf32>
    %8 = vector.shape_cast %7 : vector<1x8x32xf32> to vector<8x32xf32>
    %c0_9 = arith.constant 0 : index
    %c0_10 = arith.constant 0 : index
    %9 = vector.load %arg6[%c0_9, %c0_10] : memref<32x64xf32, #tpu.memory_space<vmem>>, vector<32x64xf32>
    %cst_11 = arith.constant dense<0.000000e+00> : vector<8x64xf32>
    %10 = tpu.matmul %8, %9, %cst_11 {dimension_numbers = #tpu.dot_dimension_numbers<[1], [0], [0], [1], [0, 0, 1, 1], [], []>} : vector<8x32xf32>, vector<32x64xf32>, vector<8x64xf32> -> vector<8x64xf32>
    %c0_12 = arith.constant 0 : index
    %c0_13 = arith.constant 0 : index
    %11 = vector.load %arg7[%c0_12, %c0_13] : memref<1x64xf32, #tpu.memory_space<vmem>>, vector<1x64xf32>
    %12 = vector.broadcast %11 : vector<1x64xf32> to vector<8x64xf32>
    %13 = arith.addf %10, %12 : vector<8x64xf32>
    %14 = vector.extract_strided_slice %6 {offsets = [0, 0], sizes = [8, 4], strides = [1, 1]} : vector<8x32xf32> to vector<8x4xf32>
    %15 = vector.extract_strided_slice %13 {offsets = [0, 0], sizes = [8, 4], strides = [1, 1]} : vector<8x64xf32> to vector<8x4xf32>
    %16 = vector.extract_strided_slice %13 {offsets = [0, 32], sizes = [8, 4], strides = [1, 1]} : vector<8x64xf32> to vector<8x4xf32>
    %cst_14 = arith.constant dense<0.000000e+00> : vector<8x8xf32>
    %17 = tpu.matmul %14, %15, %cst_14 {dimension_numbers = #tpu.dot_dimension_numbers<[1], [1], [0], [0], [0, 0, 1, 0], [], []>} : vector<8x4xf32>, vector<8x4xf32>, vector<8x8xf32> -> vector<8x8xf32>
    %cst_15 = arith.constant dense<0xFF800000> : vector<8xf32>
    %18 = vector.multi_reduction <maximumf>, %17, %cst_15 [1] : vector<8x8xf32> to vector<8xf32>
    %19 = vector.shape_cast %18 : vector<8xf32> to vector<8x1xf32>
    %20 = vector.broadcast %19 : vector<8x1xf32> to vector<8x8xf32>
    %21 = arith.subf %17, %20 : vector<8x8xf32>
    %22 = math.exp %21 : vector<8x8xf32>
    %cst_16 = arith.constant dense<0.000000e+00> : vector<8xf32>
    %23 = vector.multi_reduction <add>, %22, %cst_16 [1] : vector<8x8xf32> to vector<8xf32>
    %24 = vector.shape_cast %23 : vector<8xf32> to vector<8x1xf32>
    %25 = tpu.reciprocal %24 {approx = true} : vector<8x1xf32> -> vector<8x1xf32>
    %26 = vector.broadcast %25 : vector<8x1xf32> to vector<8x8xf32>
    %27 = arith.mulf %22, %26 : vector<8x8xf32>
    %cst_17 = arith.constant dense<0.000000e+00> : vector<8x4xf32>
    %28 = tpu.matmul %27, %16, %cst_17 {dimension_numbers = #tpu.dot_dimension_numbers<[1], [0], [0], [1], [0, 0, 1, 1], [], []>} : vector<8x8xf32>, vector<8x4xf32>, vector<8x4xf32> -> vector<8x4xf32>
    %29 = vector.extract_strided_slice %6 {offsets = [0, 4], sizes = [8, 4], strides = [1, 1]} : vector<8x32xf32> to vector<8x4xf32>
    %30 = vector.extract_strided_slice %13 {offsets = [0, 4], sizes = [8, 4], strides = [1, 1]} : vector<8x64xf32> to vector<8x4xf32>
    %31 = vector.extract_strided_slice %13 {offsets = [0, 36], sizes = [8, 4], strides = [1, 1]} : vector<8x64xf32> to vector<8x4xf32>
    %cst_18 = arith.constant dense<0.000000e+00> : vector<8x8xf32>
    %32 = tpu.matmul %29, %30, %cst_18 {dimension_numbers = #tpu.dot_dimension_numbers<[1], [1], [0], [0], [0, 0, 1, 0], [], []>} : vector<8x4xf32>, vector<8x4xf32>, vector<8x8xf32> -> vector<8x8xf32>
    %cst_19 = arith.constant dense<0xFF800000> : vector<8xf32>
    %33 = vector.multi_reduction <maximumf>, %32, %cst_19 [1] : vector<8x8xf32> to vector<8xf32>
    %34 = vector.shape_cast %33 : vector<8xf32> to vector<8x1xf32>
    %35 = vector.broadcast %34 : vector<8x1xf32> to vector<8x8xf32>
    %36 = arith.subf %32, %35 : vector<8x8xf32>
    %37 = math.exp %36 : vector<8x8xf32>
    %cst_20 = arith.constant dense<0.000000e+00> : vector<8xf32>
    %38 = vector.multi_reduction <add>, %37, %cst_20 [1] : vector<8x8xf32> to vector<8xf32>
    %39 = vector.shape_cast %38 : vector<8xf32> to vector<8x1xf32>
    %40 = tpu.reciprocal %39 {approx = true} : vector<8x1xf32> -> vector<8x1xf32>
    %41 = vector.broadcast %40 : vector<8x1xf32> to vector<8x8xf32>
    %42 = arith.mulf %37, %41 : vector<8x8xf32>
    %cst_21 = arith.constant dense<0.000000e+00> : vector<8x4xf32>
    %43 = tpu.matmul %42, %31, %cst_21 {dimension_numbers = #tpu.dot_dimension_numbers<[1], [0], [0], [1], [0, 0, 1, 1], [], []>} : vector<8x8xf32>, vector<8x4xf32>, vector<8x4xf32> -> vector<8x4xf32>
    %44 = vector.extract_strided_slice %6 {offsets = [0, 8], sizes = [8, 4], strides = [1, 1]} : vector<8x32xf32> to vector<8x4xf32>
    %45 = vector.extract_strided_slice %13 {offsets = [0, 8], sizes = [8, 4], strides = [1, 1]} : vector<8x64xf32> to vector<8x4xf32>
    %46 = vector.extract_strided_slice %13 {offsets = [0, 40], sizes = [8, 4], strides = [1, 1]} : vector<8x64xf32> to vector<8x4xf32>
    %cst_22 = arith.constant dense<0.000000e+00> : vector<8x8xf32>
    %47 = tpu.matmul %44, %45, %cst_22 {dimension_numbers = #tpu.dot_dimension_numbers<[1], [1], [0], [0], [0, 0, 1, 0], [], []>} : vector<8x4xf32>, vector<8x4xf32>, vector<8x8xf32> -> vector<8x8xf32>
    %cst_23 = arith.constant dense<0xFF800000> : vector<8xf32>
    %48 = vector.multi_reduction <maximumf>, %47, %cst_23 [1] : vector<8x8xf32> to vector<8xf32>
    %49 = vector.shape_cast %48 : vector<8xf32> to vector<8x1xf32>
    %50 = vector.broadcast %49 : vector<8x1xf32> to vector<8x8xf32>
    %51 = arith.subf %47, %50 : vector<8x8xf32>
    %52 = math.exp %51 : vector<8x8xf32>
    %cst_24 = arith.constant dense<0.000000e+00> : vector<8xf32>
    %53 = vector.multi_reduction <add>, %52, %cst_24 [1] : vector<8x8xf32> to vector<8xf32>
    %54 = vector.shape_cast %53 : vector<8xf32> to vector<8x1xf32>
    %55 = tpu.reciprocal %54 {approx = true} : vector<8x1xf32> -> vector<8x1xf32>
    %56 = vector.broadcast %55 : vector<8x1xf32> to vector<8x8xf32>
    %57 = arith.mulf %52, %56 : vector<8x8xf32>
    %cst_25 = arith.constant dense<0.000000e+00> : vector<8x4xf32>
    %58 = tpu.matmul %57, %46, %cst_25 {dimension_numbers = #tpu.dot_dimension_numbers<[1], [0], [0], [1], [0, 0, 1, 1], [], []>} : vector<8x8xf32>, vector<8x4xf32>, vector<8x4xf32> -> vector<8x4xf32>
    %59 = vector.extract_strided_slice %6 {offsets = [0, 12], sizes = [8, 4], strides = [1, 1]} : vector<8x32xf32> to vector<8x4xf32>
    %60 = vector.extract_strided_slice %13 {offsets = [0, 12], sizes = [8, 4], strides = [1, 1]} : vector<8x64xf32> to vector<8x4xf32>
    %61 = vector.extract_strided_slice %13 {offsets = [0, 44], sizes = [8, 4], strides = [1, 1]} : vector<8x64xf32> to vector<8x4xf32>
    %cst_26 = arith.constant dense<0.000000e+00> : vector<8x8xf32>
    %62 = tpu.matmul %59, %60, %cst_26 {dimension_numbers = #tpu.dot_dimension_numbers<[1], [1], [0], [0], [0, 0, 1, 0], [], []>} : vector<8x4xf32>, vector<8x4xf32>, vector<8x8xf32> -> vector<8x8xf32>
    %cst_27 = arith.constant dense<0xFF800000> : vector<8xf32>
    %63 = vector.multi_reduction <maximumf>, %62, %cst_27 [1] : vector<8x8xf32> to vector<8xf32>
    %64 = vector.shape_cast %63 : vector<8xf32> to vector<8x1xf32>
    %65 = vector.broadcast %64 : vector<8x1xf32> to vector<8x8xf32>
    %66 = arith.subf %62, %65 : vector<8x8xf32>
    %67 = math.exp %66 : vector<8x8xf32>
    %cst_28 = arith.constant dense<0.000000e+00> : vector<8xf32>
    %68 = vector.multi_reduction <add>, %67, %cst_28 [1] : vector<8x8xf32> to vector<8xf32>
    %69 = vector.shape_cast %68 : vector<8xf32> to vector<8x1xf32>
    %70 = tpu.reciprocal %69 {approx = true} : vector<8x1xf32> -> vector<8x1xf32>
    %71 = vector.broadcast %70 : vector<8x1xf32> to vector<8x8xf32>
    %72 = arith.mulf %67, %71 : vector<8x8xf32>
    %cst_29 = arith.constant dense<0.000000e+00> : vector<8x4xf32>
    %73 = tpu.matmul %72, %61, %cst_29 {dimension_numbers = #tpu.dot_dimension_numbers<[1], [0], [0], [1], [0, 0, 1, 1], [], []>} : vector<8x8xf32>, vector<8x4xf32>, vector<8x4xf32> -> vector<8x4xf32>
    %74 = vector.extract_strided_slice %6 {offsets = [0, 16], sizes = [8, 4], strides = [1, 1]} : vector<8x32xf32> to vector<8x4xf32>
    %75 = vector.extract_strided_slice %13 {offsets = [0, 16], sizes = [8, 4], strides = [1, 1]} : vector<8x64xf32> to vector<8x4xf32>
    %76 = vector.extract_strided_slice %13 {offsets = [0, 48], sizes = [8, 4], strides = [1, 1]} : vector<8x64xf32> to vector<8x4xf32>
    %cst_30 = arith.constant dense<0.000000e+00> : vector<8x8xf32>
    %77 = tpu.matmul %74, %75, %cst_30 {dimension_numbers = #tpu.dot_dimension_numbers<[1], [1], [0], [0], [0, 0, 1, 0], [], []>} : vector<8x4xf32>, vector<8x4xf32>, vector<8x8xf32> -> vector<8x8xf32>
    %cst_31 = arith.constant dense<0xFF800000> : vector<8xf32>
    %78 = vector.multi_reduction <maximumf>, %77, %cst_31 [1] : vector<8x8xf32> to vector<8xf32>
    %79 = vector.shape_cast %78 : vector<8xf32> to vector<8x1xf32>
    %80 = vector.broadcast %79 : vector<8x1xf32> to vector<8x8xf32>
    %81 = arith.subf %77, %80 : vector<8x8xf32>
    %82 = math.exp %81 : vector<8x8xf32>
    %cst_32 = arith.constant dense<0.000000e+00> : vector<8xf32>
    %83 = vector.multi_reduction <add>, %82, %cst_32 [1] : vector<8x8xf32> to vector<8xf32>
    %84 = vector.shape_cast %83 : vector<8xf32> to vector<8x1xf32>
    %85 = tpu.reciprocal %84 {approx = true} : vector<8x1xf32> -> vector<8x1xf32>
    %86 = vector.broadcast %85 : vector<8x1xf32> to vector<8x8xf32>
    %87 = arith.mulf %82, %86 : vector<8x8xf32>
    %cst_33 = arith.constant dense<0.000000e+00> : vector<8x4xf32>
    %88 = tpu.matmul %87, %76, %cst_33 {dimension_numbers = #tpu.dot_dimension_numbers<[1], [0], [0], [1], [0, 0, 1, 1], [], []>} : vector<8x8xf32>, vector<8x4xf32>, vector<8x4xf32> -> vector<8x4xf32>
    %89 = vector.extract_strided_slice %6 {offsets = [0, 20], sizes = [8, 4], strides = [1, 1]} : vector<8x32xf32> to vector<8x4xf32>
    %90 = vector.extract_strided_slice %13 {offsets = [0, 20], sizes = [8, 4], strides = [1, 1]} : vector<8x64xf32> to vector<8x4xf32>
    %91 = vector.extract_strided_slice %13 {offsets = [0, 52], sizes = [8, 4], strides = [1, 1]} : vector<8x64xf32> to vector<8x4xf32>
    %cst_34 = arith.constant dense<0.000000e+00> : vector<8x8xf32>
    %92 = tpu.matmul %89, %90, %cst_34 {dimension_numbers = #tpu.dot_dimension_numbers<[1], [1], [0], [0], [0, 0, 1, 0], [], []>} : vector<8x4xf32>, vector<8x4xf32>, vector<8x8xf32> -> vector<8x8xf32>
    %cst_35 = arith.constant dense<0xFF800000> : vector<8xf32>
    %93 = vector.multi_reduction <maximumf>, %92, %cst_35 [1] : vector<8x8xf32> to vector<8xf32>
    %94 = vector.shape_cast %93 : vector<8xf32> to vector<8x1xf32>
    %95 = vector.broadcast %94 : vector<8x1xf32> to vector<8x8xf32>
    %96 = arith.subf %92, %95 : vector<8x8xf32>
    %97 = math.exp %96 : vector<8x8xf32>
    %cst_36 = arith.constant dense<0.000000e+00> : vector<8xf32>
    %98 = vector.multi_reduction <add>, %97, %cst_36 [1] : vector<8x8xf32> to vector<8xf32>
    %99 = vector.shape_cast %98 : vector<8xf32> to vector<8x1xf32>
    %100 = tpu.reciprocal %99 {approx = true} : vector<8x1xf32> -> vector<8x1xf32>
    %101 = vector.broadcast %100 : vector<8x1xf32> to vector<8x8xf32>
    %102 = arith.mulf %97, %101 : vector<8x8xf32>
    %cst_37 = arith.constant dense<0.000000e+00> : vector<8x4xf32>
    %103 = tpu.matmul %102, %91, %cst_37 {dimension_numbers = #tpu.dot_dimension_numbers<[1], [0], [0], [1], [0, 0, 1, 1], [], []>} : vector<8x8xf32>, vector<8x4xf32>, vector<8x4xf32> -> vector<8x4xf32>
    %104 = vector.extract_strided_slice %6 {offsets = [0, 24], sizes = [8, 4], strides = [1, 1]} : vector<8x32xf32> to vector<8x4xf32>
    %105 = vector.extract_strided_slice %13 {offsets = [0, 24], sizes = [8, 4], strides = [1, 1]} : vector<8x64xf32> to vector<8x4xf32>
    %106 = vector.extract_strided_slice %13 {offsets = [0, 56], sizes = [8, 4], strides = [1, 1]} : vector<8x64xf32> to vector<8x4xf32>
    %cst_38 = arith.constant dense<0.000000e+00> : vector<8x8xf32>
    %107 = tpu.matmul %104, %105, %cst_38 {dimension_numbers = #tpu.dot_dimension_numbers<[1], [1], [0], [0], [0, 0, 1, 0], [], []>} : vector<8x4xf32>, vector<8x4xf32>, vector<8x8xf32> -> vector<8x8xf32>
    %cst_39 = arith.constant dense<0xFF800000> : vector<8xf32>
    %108 = vector.multi_reduction <maximumf>, %107, %cst_39 [1] : vector<8x8xf32> to vector<8xf32>
    %109 = vector.shape_cast %108 : vector<8xf32> to vector<8x1xf32>
    %110 = vector.broadcast %109 : vector<8x1xf32> to vector<8x8xf32>
    %111 = arith.subf %107, %110 : vector<8x8xf32>
    %112 = math.exp %111 : vector<8x8xf32>
    %cst_40 = arith.constant dense<0.000000e+00> : vector<8xf32>
    %113 = vector.multi_reduction <add>, %112, %cst_40 [1] : vector<8x8xf32> to vector<8xf32>
    %114 = vector.shape_cast %113 : vector<8xf32> to vector<8x1xf32>
    %115 = tpu.reciprocal %114 {approx = true} : vector<8x1xf32> -> vector<8x1xf32>
    %116 = vector.broadcast %115 : vector<8x1xf32> to vector<8x8xf32>
    %117 = arith.mulf %112, %116 : vector<8x8xf32>
    %cst_41 = arith.constant dense<0.000000e+00> : vector<8x4xf32>
    %118 = tpu.matmul %117, %106, %cst_41 {dimension_numbers = #tpu.dot_dimension_numbers<[1], [0], [0], [1], [0, 0, 1, 1], [], []>} : vector<8x8xf32>, vector<8x4xf32>, vector<8x4xf32> -> vector<8x4xf32>
    %119 = vector.extract_strided_slice %6 {offsets = [0, 28], sizes = [8, 4], strides = [1, 1]} : vector<8x32xf32> to vector<8x4xf32>
    %120 = vector.extract_strided_slice %13 {offsets = [0, 28], sizes = [8, 4], strides = [1, 1]} : vector<8x64xf32> to vector<8x4xf32>
    %121 = vector.extract_strided_slice %13 {offsets = [0, 60], sizes = [8, 4], strides = [1, 1]} : vector<8x64xf32> to vector<8x4xf32>
    %cst_42 = arith.constant dense<0.000000e+00> : vector<8x8xf32>
    %122 = tpu.matmul %119, %120, %cst_42 {dimension_numbers = #tpu.dot_dimension_numbers<[1], [1], [0], [0], [0, 0, 1, 0], [], []>} : vector<8x4xf32>, vector<8x4xf32>, vector<8x8xf32> -> vector<8x8xf32>
    %cst_43 = arith.constant dense<0xFF800000> : vector<8xf32>
    %123 = vector.multi_reduction <maximumf>, %122, %cst_43 [1] : vector<8x8xf32> to vector<8xf32>
    %124 = vector.shape_cast %123 : vector<8xf32> to vector<8x1xf32>
    %125 = vector.broadcast %124 : vector<8x1xf32> to vector<8x8xf32>
    %126 = arith.subf %122, %125 : vector<8x8xf32>
    %127 = math.exp %126 : vector<8x8xf32>
    %cst_44 = arith.constant dense<0.000000e+00> : vector<8xf32>
    %128 = vector.multi_reduction <add>, %127, %cst_44 [1] : vector<8x8xf32> to vector<8xf32>
    %129 = vector.shape_cast %128 : vector<8xf32> to vector<8x1xf32>
    %130 = tpu.reciprocal %129 {approx = true} : vector<8x1xf32> -> vector<8x1xf32>
    %131 = vector.broadcast %130 : vector<8x1xf32> to vector<8x8xf32>
    %132 = arith.mulf %127, %131 : vector<8x8xf32>
    %cst_45 = arith.constant dense<0.000000e+00> : vector<8x4xf32>
    %133 = tpu.matmul %132, %121, %cst_45 {dimension_numbers = #tpu.dot_dimension_numbers<[1], [0], [0], [1], [0, 0, 1, 1], [], []>} : vector<8x8xf32>, vector<8x4xf32>, vector<8x4xf32> -> vector<8x4xf32>
    %134 = tpu.concatenate %28, %43, %58, %73, %88, %103, %118, %133 in 1 : vector<8x4xf32>, vector<8x4xf32>, vector<8x4xf32>, vector<8x4xf32>, vector<8x4xf32>, vector<8x4xf32>, vector<8x4xf32>, vector<8x4xf32> -> vector<8x32xf32>
    %c0_46 = arith.constant 0 : index
    %c0_47 = arith.constant 0 : index
    %135 = vector.load %arg8[%c0_46, %c0_47] : memref<32x32xf32, #tpu.memory_space<vmem>>, vector<32x32xf32>
    %cst_48 = arith.constant dense<0.000000e+00> : vector<8x32xf32>
    %136 = tpu.matmul %134, %135, %cst_48 {dimension_numbers = #tpu.dot_dimension_numbers<[1], [0], [0], [1], [0, 0, 1, 1], [], []>} : vector<8x32xf32>, vector<32x32xf32>, vector<8x32xf32> -> vector<8x32xf32>
    %c0_49 = arith.constant 0 : index
    %c0_50 = arith.constant 0 : index
    %137 = vector.load %arg9[%c0_49, %c0_50] : memref<1x32xf32, #tpu.memory_space<vmem>>, vector<1x32xf32>
    %138 = vector.broadcast %137 : vector<1x32xf32> to vector<8x32xf32>
    %139 = arith.addf %136, %138 : vector<8x32xf32>
    %c0_51 = arith.constant 0 : index
    %c0_52 = arith.constant 0 : index
    %c0_53 = arith.constant 0 : index
    %140 = vector.load %arg10[%c0_51, %c0_52, %c0_53] : memref<1x8x32xf32, #tpu.memory_space<vmem>>, vector<1x8x32xf32>
    %141 = vector.shape_cast %140 : vector<1x8x32xf32> to vector<8x32xf32>
    %142 = vector.shape_cast %139 : vector<8x32xf32> to vector<1x8x32xf32>
    tpu.vector_store %arg10[%c0_51, %c0_52, %c0_53], %142 {strides = array<i32>} : memref<1x8x32xf32, #tpu.memory_space<vmem>>, vector<1x8x32xf32>,
    return
  }
  func.func @transform_0(%arg0: i32, %arg1: i32) -> (i32, i32, i32) {
    %c0_i32 = arith.constant 0 : i32
    %c0_i32_0 = arith.constant 0 : i32
    return %arg0, %arg1, %c0_i32 : i32, i32, i32
  }
  func.func @transform_1(%arg0: i32, %arg1: i32) -> (i32, i32, i32) {
    %c0_i32 = arith.constant 0 : i32
    %c0_i32_0 = arith.constant 0 : i32
    %c0_i32_1 = arith.constant 0 : i32
    return %arg0, %c0_i32, %c0_i32_0 : i32, i32, i32
  }
  func.func @transform_2(%arg0: i32, %arg1: i32) -> (i32, i32) {
    %c0_i32 = arith.constant 0 : i32
    %c0_i32_0 = arith.constant 0 : i32
    %c0_i32_1 = arith.constant 0 : i32
    return %c0_i32, %c0_i32_0 : i32, i32
  }
  func.func @transform_3(%arg0: i32, %arg1: i32) -> (i32, i32) {
    %c0_i32 = arith.constant 0 : i32
    %c0_i32_0 = arith.constant 0 : i32
    %c0_i32_1 = arith.constant 0 : i32
    return %c0_i32, %c0_i32_0 : i32, i32
  }
  func.func @transform_4(%arg0: i32, %arg1: i32) -> (i32, i32) {
    %c0_i32 = arith.constant 0 : i32
    %c0_i32_0 = arith.constant 0 : i32
    %c0_i32_1 = arith.constant 0 : i32
    return %c0_i32, %c0_i32_0 : i32, i32
  }
  func.func @transform_5(%arg0: i32, %arg1: i32) -> (i32, i32) {
    %c0_i32 = arith.constant 0 : i32
    %c0_i32_0 = arith.constant 0 : i32
    %c0_i32_1 = arith.constant 0 : i32
    return %c0_i32, %c0_i32_0 : i32, i32
  }
  func.func @transform_6(%arg0: i32, %arg1: i32) -> (i32, i32) {
    %c0_i32 = arith.constant 0 : i32
    %c0_i32_0 = arith.constant 0 : i32
    %c0_i32_1 = arith.constant 0 : i32
    return %c0_i32, %c0_i32_0 : i32, i32
  }
  func.func @transform_7(%arg0: i32, %arg1: i32) -> (i32, i32) {
    %c0_i32 = arith.constant 0 : i32
    %c0_i32_0 = arith.constant 0 : i32
    %c0_i32_1 = arith.constant 0 : i32
    return %c0_i32, %c0_i32_0 : i32, i32
  }
  func.func @transform_8(%arg0: i32, %arg1: i32) -> (i32, i32, i32) {
    %c0_i32 = arith.constant 0 : i32
    %c0_i32_0 = arith.constant 0 : i32
    return %arg0, %arg1, %c0_i32 : i32, i32, i32
  }
}

</mosaic_0001>

<llo_original>
// kernel: simple_attention.1
$region0: #{simple_attention.1}
  #allocation0 [shape = 'u32[]', space=smem, size = 0x4, offset = 0x4, fixed_abs, tag = 'smem constant byte address 0x4 - core index']
  #allocation1 [shape = 'u32[72,128]{1,0:T(1,128)}', space=vmem, size = 0x9000, scoped, tag = 'internal scratch']
  %s0 = inlined_call_operand.vmem [shape: f32[2,8,32], index: 0, kind: input, shape index: {}, may-alias: {0,1}]
  %s1 = inlined_call_operand.vmem [shape: f32[2,8,32], index: 1, kind: input, shape index: {}, may-alias: {0,1}]
  %s2 = inlined_call_operand.vmem [shape: f32[32,32], index: 2, kind: input, shape index: {}]
  %s3 = inlined_call_operand.vmem [shape: f32[1,32], index: 3, kind: input, shape index: {}]
  %s4 = inlined_call_operand.vmem [shape: f32[32,64], index: 4, kind: input, shape index: {}]
  %s5 = inlined_call_operand.vmem [shape: f32[1,64], index: 5, kind: input, shape index: {}]
  %s6 = inlined_call_operand.vmem [shape: f32[32,32], index: 6, kind: input, shape index: {}]
  %s7 = inlined_call_operand.vmem [shape: f32[1,32], index: 7, kind: input, shape index: {}]
  %s8 = inlined_call_operand.hbm [shape: f32[2,8,32], index: 8, kind: output, shape index: {}]
  %s9 = sld [smem:[#allocation0]]
  $region65: #{simple_attention.1} parent=0
    _
  %s11 = ssub.s32 1, %s9
  %s12 = scalar_select 0, %s11, %s9
  $region1: #{simple_attention.1} parent=0
    #allocation2 [shape = 'u8[8192]{0}', space=vmem, size = 0x2000, scoped, tag = 'output window, operand 0']
    #allocation3 [shape = 's32[2]{0}', space=sflag, size = 0x8, scoped, tag = 'scoped memory for simple_attention.1']
    %13 = vsyncpa [#allocation3], 0
    %s14 = scalar_lea.sflag [#allocation3], 1
    %15 = vsyncpa %s14, 0
    loop: start=0, step=1, limit=4
    $region2: #{simple_attention.1} parent=1 // loop_pre_header
      _
    $region3: #{simple_attention.1} parent=1 // loop_header
      %s17 = sphi 0, %s21
      %p18 = scmp.ge.s32.totalorder %s17, 4
      %s24 = sphi 0, %s36
      %s25 = sphi 0, %s32
      %s26 = sphi 0, %s24
      %s27 = sphi 0, %s25
      %s28 = sphi 0, %s26
      %s29 = sphi 0, %s27
      %s41 = sphi 0, %s43
      %s44 = sphi 0, %s41
      %s45 = sphi 0, %s44
      %s61 = sphi 0, %s45
      %s67 = sphi 0, %s69
      %s70 = sphi 0, %s67
      %s71 = sphi 0, %s70
      %s87 = sphi 0, %s71
      %s91 = sphi 0, %s91
      %s93 = sphi 0, %s91
      %s94 = sphi 0, %s93
      %s108 = sphi 0, %s94
      %s112 = sphi 0, %s112
      %s114 = sphi 0, %s112
      %s115 = sphi 0, %s114
      %s129 = sphi 0, %s115
      %s133 = sphi 0, %s133
      %s135 = sphi 0, %s133
      %s136 = sphi 0, %s135
      %s150 = sphi 0, %s136
      %s154 = sphi 0, %s154
      %s156 = sphi 0, %s154
      %s157 = sphi 0, %s156
      %s171 = sphi 0, %s157
      %s175 = sphi 0, %s175
      %s177 = sphi 0, %s175
      %s178 = sphi 0, %s177
      %s192 = sphi 0, %s178
      %s196 = sphi 0, %s196
      %s198 = sphi 0, %s196
      %s199 = sphi 0, %s198
      %s213 = sphi 0, %s199
      %s221 = sphi 0, %s223
      %s224 = sphi 0, %s221
      %s225 = sphi 0, %s224
      %s241 = sphi 0, %s225
    $region4: #{simple_attention.1} parent=1 // loop_header_branch
      %20 = sbr.rel (%p18) target = $region8
    $region5: #{simple_attention.1} parent=1 // loop_body
      %s22 = ssub.s32 %s17, 1
      %s23 = ssub.s32 %s17, 2
      %s30 = sadd.s32 1, %s25
      %p31 = scmp.ge.s32.totalorder %s30, 1
      %s32 = scalar_select %p31, 0, %s30
      %s33 = sadd.s32 1, %s24
      %s34 = scalar_select %p31, %s33, %s24
      %p35 = scmp.ge.s32.totalorder %s34, 2
      %s36 = scalar_select %p35, 0, %s34
      %s37 = ssub.s32 %s24, %s36
      %s38 = ssub.s32 %s25, %s32
      %s39 = sor.u32 %s37, %s38
      %p40 = scmp.eq.s32.totalorder %s39, 0
      %s42 = sadd.s32 %s41, 1
      %s43 = scalar_select %p40, %s41, %s42
      %p46 = pneg %p40
      %p47 = scmp.eq.s32.totalorder %s17, 1
      %p48 = por %p46, %p47
      %p49 = scmp.ne.s32.totalorder %s41, %s44
      %p50 = scmp.eq.s32.totalorder %s17, 0
      %p51 = por %p49, %p50
      %p52 = scmp.ne.s32.totalorder %s41, %s44
      %p53 = scmp.eq.s32.totalorder %s22, 1
      %p54 = por %p52, %p53
      %p55 = scmp.ne.s32.totalorder %s44, %s45
      %p56 = scmp.eq.s32.totalorder %s22, 0
      %p57 = por %p55, %p56
      %p58 = scmp.ne.s32.totalorder %s44, %s45
      %p59 = scmp.eq.s32.totalorder %s23, 1
      %p60 = por %p58, %p59
      %p62 = scmp.ne.s32.totalorder %s45, %s61
      %p63 = scmp.eq.s32.totalorder %s23, 0
      %p64 = por %p62, %p63
      %s65 = ssub.s32 %s24, %s36
      %p66 = scmp.eq.s32.totalorder %s65, 0
      %s68 = sadd.s32 %s67, 1
      %s69 = scalar_select %p66, %s67, %s68
      %p72 = pneg %p66
      %p73 = scmp.eq.s32.totalorder %s17, 1
      %p74 = por %p72, %p73
      %p75 = scmp.ne.s32.totalorder %s67, %s70
      %p76 = scmp.eq.s32.totalorder %s17, 0
      %p77 = por %p75, %p76
      %p78 = scmp.ne.s32.totalorder %s67, %s70
      %p79 = scmp.eq.s32.totalorder %s22, 1
      %p80 = por %p78, %p79
      %p81 = scmp.ne.s32.totalorder %s70, %s71
      %p82 = scmp.eq.s32.totalorder %s22, 0
      %p83 = por %p81, %p82
      %p84 = scmp.ne.s32.totalorder %s70, %s71
      %p85 = scmp.eq.s32.totalorder %s23, 1
      %p86 = por %p84, %p85
      %p88 = scmp.ne.s32.totalorder %s71, %s87
      %p89 = scmp.eq.s32.totalorder %s23, 0
      %p90 = por %p88, %p89
      %s92 = sadd.s32 %s91, 1
      %p95 = scmp.eq.s32.totalorder %s17, 1
      %p96 = scmp.ne.s32.totalorder %s91, %s93
      %p97 = scmp.eq.s32.totalorder %s17, 0
      %p98 = por %p96, %p97
      %p99 = scmp.ne.s32.totalorder %s91, %s93
      %p100 = scmp.eq.s32.totalorder %s22, 1
      %p101 = por %p99, %p100
      %p102 = scmp.ne.s32.totalorder %s93, %s94
      %p103 = scmp.eq.s32.totalorder %s22, 0
      %p104 = por %p102, %p103
      %p105 = scmp.ne.s32.totalorder %s93, %s94
      %p106 = scmp.eq.s32.totalorder %s23, 1
      %p107 = por %p105, %p106
      %p109 = scmp.ne.s32.totalorder %s94, %s108
      %p110 = scmp.eq.s32.totalorder %s23, 0
      %p111 = por %p109, %p110
      %s113 = sadd.s32 %s112, 1
      %p116 = scmp.eq.s32.totalorder %s17, 1
      %p117 = scmp.ne.s32.totalorder %s112, %s114
      %p118 = scmp.eq.s32.totalorder %s17, 0
      %p119 = por %p117, %p118
      %p120 = scmp.ne.s32.totalorder %s112, %s114
      %p121 = scmp.eq.s32.totalorder %s22, 1
      %p122 = por %p120, %p121
      %p123 = scmp.ne.s32.totalorder %s114, %s115
      %p124 = scmp.eq.s32.totalorder %s22, 0
      %p125 = por %p123, %p124
      %p126 = scmp.ne.s32.totalorder %s114, %s115
      %p127 = scmp.eq.s32.totalorder %s23, 1
      %p128 = por %p126, %p127
      %p130 = scmp.ne.s32.totalorder %s115, %s129
      %p131 = scmp.eq.s32.totalorder %s23, 0
      %p132 = por %p130, %p131
      %s134 = sadd.s32 %s133, 1
      %p137 = scmp.eq.s32.totalorder %s17, 1
      %p138 = scmp.ne.s32.totalorder %s133, %s135
      %p139 = scmp.eq.s32.totalorder %s17, 0
      %p140 = por %p138, %p139
      %p141 = scmp.ne.s32.totalorder %s133, %s135
      %p142 = scmp.eq.s32.totalorder %s22, 1
      %p143 = por %p141, %p142
      %p144 = scmp.ne.s32.totalorder %s135, %s136
      %p145 = scmp.eq.s32.totalorder %s22, 0
      %p146 = por %p144, %p145
      %p147 = scmp.ne.s32.totalorder %s135, %s136
      %p148 = scmp.eq.s32.totalorder %s23, 1
      %p149 = por %p147, %p148
      %p151 = scmp.ne.s32.totalorder %s136, %s150
      %p152 = scmp.eq.s32.totalorder %s23, 0
      %p153 = por %p151, %p152
      %s155 = sadd.s32 %s154, 1
      %p158 = scmp.eq.s32.totalorder %s17, 1
      %p159 = scmp.ne.s32.totalorder %s154, %s156
      %p160 = scmp.eq.s32.totalorder %s17, 0
      %p161 = por %p159, %p160
      %p162 = scmp.ne.s32.totalorder %s154, %s156
      %p163 = scmp.eq.s32.totalorder %s22, 1
      %p164 = por %p162, %p163
      %p165 = scmp.ne.s32.totalorder %s156, %s157
      %p166 = scmp.eq.s32.totalorder %s22, 0
      %p167 = por %p165, %p166
      %p168 = scmp.ne.s32.totalorder %s156, %s157
      %p169 = scmp.eq.s32.totalorder %s23, 1
      %p170 = por %p168, %p169
      %p172 = scmp.ne.s32.totalorder %s157, %s171
      %p173 = scmp.eq.s32.totalorder %s23, 0
      %p174 = por %p172, %p173
      %s176 = sadd.s32 %s175, 1
      %p179 = scmp.eq.s32.totalorder %s17, 1
      %p180 = scmp.ne.s32.totalorder %s175, %s177
      %p181 = scmp.eq.s32.totalorder %s17, 0
      %p182 = por %p180, %p181
      %p183 = scmp.ne.s32.totalorder %s175, %s177
      %p184 = scmp.eq.s32.totalorder %s22, 1
      %p185 = por %p183, %p184
      %p186 = scmp.ne.s32.totalorder %s177, %s178
      %p187 = scmp.eq.s32.totalorder %s22, 0
      %p188 = por %p186, %p187
      %p189 = scmp.ne.s32.totalorder %s177, %s178
      %p190 = scmp.eq.s32.totalorder %s23, 1
      %p191 = por %p189, %p190
      %p193 = scmp.ne.s32.totalorder %s178, %s192
      %p194 = scmp.eq.s32.totalorder %s23, 0
      %p195 = por %p193, %p194
      %s197 = sadd.s32 %s196, 1
      %p200 = scmp.eq.s32.totalorder %s17, 1
      %p201 = scmp.ne.s32.totalorder %s196, %s198
      %p202 = scmp.eq.s32.totalorder %s17, 0
      %p203 = por %p201, %p202
      %p204 = scmp.ne.s32.totalorder %s196, %s198
      %p205 = scmp.eq.s32.totalorder %s22, 1
      %p206 = por %p204, %p205
      %p207 = scmp.ne.s32.totalorder %s198, %s199
      %p208 = scmp.eq.s32.totalorder %s22, 0
      %p209 = por %p207, %p208
      %p210 = scmp.ne.s32.totalorder %s198, %s199
      %p211 = scmp.eq.s32.totalorder %s23, 1
      %p212 = por %p210, %p211
      %p214 = scmp.ne.s32.totalorder %s199, %s213
      %p215 = scmp.eq.s32.totalorder %s23, 0
      %p216 = por %p214, %p215
      %s217 = ssub.s32 %s24, %s36
      %s218 = ssub.s32 %s25, %s32
      %s219 = sor.u32 %s217, %s218
      %p220 = scmp.eq.s32.totalorder %s219, 0
      %s222 = sadd.s32 %s221, 1
      %s223 = scalar_select %p220, %s221, %s222
      %p226 = pneg %p220
      %p227 = scmp.eq.s32.totalorder %s17, 1
      %p228 = por %p226, %p227
      %p229 = scmp.ne.s32.totalorder %s221, %s224
      %p230 = scmp.eq.s32.totalorder %s17, 0
      %p231 = por %p229, %p230
      %p232 = scmp.ne.s32.totalorder %s221, %s224
      %p233 = scmp.eq.s32.totalorder %s22, 1
      %p234 = por %p232, %p233
      %p235 = scmp.ne.s32.totalorder %s224, %s225
      %p236 = scmp.eq.s32.totalorder %s22, 0
      %p237 = por %p235, %p236
      %p238 = scmp.ne.s32.totalorder %s224, %s225
      %p239 = scmp.eq.s32.totalorder %s23, 1
      %p240 = por %p238, %p239
      %p242 = scmp.ne.s32.totalorder %s225, %s241
      %p243 = scmp.eq.s32.totalorder %s23, 0
      %p244 = por %p242, %p243
      %p245 = scmp.le.s32.totalorder 1, %s17
      %p246 = scmp.lt.s32.totalorder %s17, 3
      %p247 = pnand %p245, %p246
      %p248 = pneg %p247
      // Predicated region
      $region9: #{simple_attention.1} parent=5 // pred_check
        _
      $region10: #{simple_attention.1} parent=5 // pred_check_branch
        %250 = sbr.rel (%p247) target = $region12
      $region11: #{simple_attention.1} parent=5 // pred_region
        %s251 = ssub.s32 %s17, 1
        // Predicated region
        $region13: #{simple_attention.1} parent=11 // pred_check
          %p252 = pneg %p104
        $region14: #{simple_attention.1} parent=11 // pred_check_branch
          %254 = sbr.rel (%p252) target = $region16
        $region15: #{simple_attention.1} parent=11 // pred_region
          _
        $region16: #{simple_attention.1} parent=11 // pred_fallthru
          _
        // Predicated region
        $region17: #{simple_attention.1} parent=11 // pred_check
          %p255 = pneg %p125
        $region18: #{simple_attention.1} parent=11 // pred_check_branch
          %257 = sbr.rel (%p255) target = $region20
        $region19: #{simple_attention.1} parent=11 // pred_region
          _
        $region20: #{simple_attention.1} parent=11 // pred_fallthru
          _
        // Predicated region
        $region21: #{simple_attention.1} parent=11 // pred_check
          %p258 = pneg %p146
        $region22: #{simple_attention.1} parent=11 // pred_check_branch
          %260 = sbr.rel (%p258) target = $region24
        $region23: #{simple_attention.1} parent=11 // pred_region
          _
        $region24: #{simple_attention.1} parent=11 // pred_fallthru
          _
        // Predicated region
        $region25: #{simple_attention.1} parent=11 // pred_check
          %p261 = pneg %p167
        $region26: #{simple_attention.1} parent=11 // pred_check_branch
          %263 = sbr.rel (%p261) target = $region28
        $region27: #{simple_attention.1} parent=11 // pred_region
          _
        $region28: #{simple_attention.1} parent=11 // pred_fallthru
          _
        // Predicated region
        $region29: #{simple_attention.1} parent=11 // pred_check
          %p264 = pneg %p188
        $region30: #{simple_attention.1} parent=11 // pred_check_branch
          %266 = sbr.rel (%p264) target = $region32
        $region31: #{simple_attention.1} parent=11 // pred_region
          _
        $region32: #{simple_attention.1} parent=11 // pred_fallthru
          _
        // Predicated region
        $region33: #{simple_attention.1} parent=11 // pred_check
          %p267 = pneg %p209
        $region34: #{simple_attention.1} parent=11 // pred_check_branch
          %269 = sbr.rel (%p267) target = $region36
        $region35: #{simple_attention.1} parent=11 // pred_region
          _
        $region36: #{simple_attention.1} parent=11 // pred_fallthru
          _
      $region12: #{simple_attention.1} parent=5 // pred_fallthru
        _
      %p270 = scmp.lt.s32.totalorder %s17, 2
      // Predicated region
      $region37: #{simple_attention.1} parent=5 // pred_check
        %p271 = pneg %p270
      $region38: #{simple_attention.1} parent=5 // pred_check_branch
        %273 = sbr.rel (%p271) target = $region40
      $region39: #{simple_attention.1} parent=5 // pred_region
        // Predicated region
        $region41: #{simple_attention.1} parent=39 // pred_check
          %p274 = pneg %p51
        $region42: #{simple_attention.1} parent=39 // pred_check_branch
          %276 = sbr.rel (%p274) target = $region44
        $region43: #{simple_attention.1} parent=39 // pred_region
          %p277 = scmp.lt.s32.totalorder %s24, 1
          %s278 = scalar_select %p277, %s24, 1
          %p279 = scmp.lt.s32.totalorder %s25, 0
          %s280 = scalar_select %p279, %s25, 0
          %s281 = sadd.s32 %s280, %s278
          %s282 = smul.addr %s281, 8
          %s283 = scalar_lea.vmem %s0, %s282
        $region44: #{simple_attention.1} parent=39 // pred_fallthru
          _
        // Predicated region
        $region45: #{simple_attention.1} parent=39 // pred_check
          %p284 = pneg %p77
        $region46: #{simple_attention.1} parent=39 // pred_check_branch
          %286 = sbr.rel (%p284) target = $region48
        $region47: #{simple_attention.1} parent=39 // pred_region
          %p287 = scmp.lt.s32.totalorder %s24, 1
          %s288 = scalar_select %p287, %s24, 1
          %s289 = smul.addr %s288, 8
          %s290 = scalar_lea.vmem %s1, %s289
        $region48: #{simple_attention.1} parent=39 // pred_fallthru
          _
      $region40: #{simple_attention.1} parent=5 // pred_fallthru
        _
      %p291 = scmp.le.s32.totalorder 1, %s17
      %p292 = scmp.lt.s32.totalorder %s17, 3
      %p293 = pnand %p291, %p292
      %p294 = pneg %p293
      // Predicated region
      $region49: #{simple_attention.1} parent=5 // pred_check
        _
      $region50: #{simple_attention.1} parent=5 // pred_check_branch
        %296 = sbr.rel (%p293) target = $region52
      $region51: #{simple_attention.1} parent=5 // pred_region
        %s297 = ssub.s32 %s17, 1
        %p298 = scmp.lt.s32.totalorder %s26, 1
        %s299 = scalar_select %p298, %s26, 1
        %p300 = scmp.lt.s32.totalorder %s27, 0
        %s301 = scalar_select %p300, %s27, 0
        %s302 = sadd.s32 %s301, %s299
        %s303 = smul.addr %s302, 8
        %s304 = scalar_lea.vmem %s0, %s303
        %p305 = pneg %p57
        %p306 = pneg %p54
        %p307 = scmp.lt.s32.totalorder %s26, 1
        %s308 = scalar_select %p307, %s26, 1
        %s309 = smul.addr %s308, 8
        %s310 = scalar_lea.vmem %s1, %s309
        %p311 = pneg %p83
        %p312 = pneg %p80
        %p313 = pneg %p104
        %p314 = pneg %p101
        %p315 = pneg %p125
        %p316 = pneg %p122
        %p317 = pneg %p146
        %p318 = pneg %p143
        %p319 = pneg %p167
        %p320 = pneg %p164
        %p321 = pneg %p188
        %p322 = pneg %p185
        %p323 = pneg %p209
        %p324 = pneg %p206
        %p325 = pneg %p237
        %p326 = pneg %p234
        %s327 = sand.u32 %s224, 1
        %s328 = scalar_lea.sflag [#allocation3], %s327
        %s329 = sand.u32 %s224, 1
        %s330 = smul.addr %s329, 8
        %s331 = scalar_lea.vmem [#allocation2], %s330
        %p332 = scmp.lt.s32.totalorder %s26, 1
        %s333 = scalar_select %p332, %s26, 1
        %p334 = scmp.lt.s32.totalorder %s27, 0
        %s335 = scalar_select %p334, %s27, 0
        %s336 = sadd.s32 %s335, %s333
        %s337 = smul.addr %s336, 8
        %s338 = scalar_lea.vmem %s0, %s337
        %p339 = scmp.lt.s32.totalorder %s26, 1
        %s340 = scalar_select %p339, %s26, 1
        %s341 = smul.addr %s340, 8
        %s342 = scalar_lea.vmem %s1, %s341
        %v343 = vld [vmem:[%s338] sm:$0xff]
        %v344 = vld [vmem:[%s2] sm:$0xff]
        %v345 = vld [vmem:[%s2 + $0x8] sm:$0xff]
        %v346 = vld [vmem:[%s2 + $0x10] sm:$0xff]
        %v347 = vld [vmem:[%s2 + $0x18] sm:$0xff]
        %v348 = vld [vmem:[%s3] sm:$0x1]
        %v350 = vperm.slane %v348, 0
        %vm352 = vcmask 261120
        %v354 = vsel %vm352, %v343, 0
        %356 = vmatpush.msra.mxu0 0.0
        %357 = vmatpush.msra.mxu0 0.0
        %358 = vmatpush.msra.mxu0 0.0
        %359 = vmatpush.msra.mxu0 0.0
        %360 = vmatpush.msra.mxu0 0.0
        %361 = vmatpush.msra.mxu0 0.0
        %362 = vmatpush.msra.mxu0 0.0
        %363 = vmatpush.msra.mxu0 0.0
        %364 = vmatpush.msra.mxu0 0.0
        %365 = vmatpush.msra.mxu0 0.0
        %366 = vmatpush.msra.mxu0 0.0
        %367 = vmatpush.msra.mxu0 0.0
        %368 = vmatpush.msra.mxu0 %v347
        %369 = vmatpush.msra.mxu0 %v346
        %370 = vmatpush.msra.mxu0 %v345
        %371 = vmatpush.msra.mxu0 %v344
        %372 = vmatmul.f32.gmra.mxu0 %v354
        %v373 = vpop.f32.mrf.mxu0
        %v374 = vadd.f32 %v350, %v373
        %375 = vdwg.mxu0
        %v376 = vld [vmem:[%s342] sm:$0xff]
        %v377 = vld [vmem:[%s4] sm:$0xff]
        %v378 = vld [vmem:[%s4 + $0x8] sm:$0xff]
        %v379 = vld [vmem:[%s4 + $0x10] sm:$0xff]
        %v380 = vld [vmem:[%s4 + $0x18] sm:$0xff]
        %v381 = vld [vmem:[%s5] sm:$0x1]
        %v383 = vperm.slane %v381, 0
        %v386 = vsel %vm352, %v376, 0
        %388 = vmatpush.msra.mxu0 0.0
        %389 = vmatpush.msra.mxu0 0.0
        %390 = vmatpush.msra.mxu0 0.0
        %391 = vmatpush.msra.mxu0 0.0
        %392 = vmatpush.msra.mxu0 0.0
        %393 = vmatpush.msra.mxu0 0.0
        %394 = vmatpush.msra.mxu0 0.0
        %395 = vmatpush.msra.mxu0 0.0
        %396 = vmatpush.msra.mxu0 0.0
        %397 = vmatpush.msra.mxu0 0.0
        %398 = vmatpush.msra.mxu0 0.0
        %399 = vmatpush.msra.mxu0 0.0
        %400 = vmatpush.msra.mxu0 %v380
        %401 = vmatpush.msra.mxu0 %v379
        %402 = vmatpush.msra.mxu0 %v378
        %403 = vmatpush.msra.mxu0 %v377
        %404 = vmatmul.f32.gmra.mxu0 %v386
        %v405 = vpop.f32.mrf.mxu0
        %v406 = vadd.f32 %v383, %v405
        %407 = vdwg.mxu0
        %vm408 = vcmask 31744
        %v410 = vsel %vm408, %v374, 0
        %v413 = vsel %vm408, %v406, 0
        %415 = vmatpush.xpose.msra.mxu0 0.0
        %416 = vmatpush.xpose.msra.mxu0 0.0
        %417 = vmatpush.xpose.msra.mxu0 0.0
        %418 = vmatpush.xpose.msra.mxu0 0.0
        %419 = vmatpush.xpose.msra.mxu0 0.0
        %420 = vmatpush.xpose.msra.mxu0 0.0
        %421 = vmatpush.xpose.msra.mxu0 0.0
        %422 = vmatpush.xpose.msra.mxu0 0.0
        %423 = vmatpush.xpose.msra.mxu0 0.0
        %424 = vmatpush.xpose.msra.mxu0 0.0
        %425 = vmatpush.xpose.msra.mxu0 0.0
        %426 = vmatpush.xpose.msra.mxu0 0.0
        %427 = vmatpush.xpose.msra.mxu0 0.0
        %428 = vmatpush.xpose.msra.mxu0 0.0
        %429 = vmatpush.xpose.msra.mxu0 0.0
        %430 = vmatpush.xpose.msra.mxu0 %v413
        %431 = vmatmul.f32.gmra.mxu0 %v410
        %v432 = vpop.f32.mrf.mxu0
        %v433 = vadd.f32 0.0, %v432
        %434 = vdwg.mxu0
        %vm435 = vcmask 64512
        %v436 = vsel %vm435, %v433, -inf
        %437 = vmax.xlane.f32.xlu0 %v436
        %v438 = vpop.xlane.xlu0 %437
        %v439 = vsub.f32 %v433, %v438
        %v440 = vmul.f32 %v439, 1.442695
        %v441 = vpow.pop %v440
        %v442 = vsel %vm435, %v441, 0.0
        %443 = vadd.xlane.f32.xlu0 %v442
        %v444 = vpop.xlane.xlu0 %443
        %v445 = vrcp.pop %v444
        %v446 = vmul.f32 %v441, %v445
        %447 = vrot.lane.b32.xlu0 %v406, 96
        %v448 = vpop.permute.xlu0 %447
        %v451 = vsel %vm435, %v446, 0
        %453 = vmatpush.msra.mxu0 0.0
        %454 = vmatpush.msra.mxu0 0.0
        %455 = vmatpush.msra.mxu0 0.0
        %456 = vmatpush.msra.mxu0 0.0
        %457 = vmatpush.msra.mxu0 0.0
        %458 = vmatpush.msra.mxu0 0.0
        %459 = vmatpush.msra.mxu0 0.0
        %460 = vmatpush.msra.mxu0 0.0
        %461 = vmatpush.msra.mxu0 0.0
        %462 = vmatpush.msra.mxu0 0.0
        %463 = vmatpush.msra.mxu0 0.0
        %464 = vmatpush.msra.mxu0 0.0
        %465 = vmatpush.msra.mxu0 0.0
        %466 = vmatpush.msra.mxu0 0.0
        %467 = vmatpush.msra.mxu0 0.0
        %468 = vmatpush.msra.mxu0 %v448
        %469 = vmatmul.f32.gmra.mxu0 %v451
        %v470 = vpop.f32.mrf.mxu0
        %v471 = vadd.f32 0.0, %v470
        %472 = vdwg.mxu0
        %473 = vrot.lane.b32.xlu0 %v374, 124
        %v474 = vpop.permute.xlu0 %473
        %475 = vrot.lane.b32.xlu0 %v406, 124
        %v476 = vpop.permute.xlu0 %475
        %v477 = vsel %vm408, %v474, 0
        %v479 = vsel %vm408, %v476, 0
        %481 = vmatpush.xpose.msra.mxu0 0.0
        %482 = vmatpush.xpose.msra.mxu0 0.0
        %483 = vmatpush.xpose.msra.mxu0 0.0
        %484 = vmatpush.xpose.msra.mxu0 0.0
        %485 = vmatpush.xpose.msra.mxu0 0.0
        %486 = vmatpush.xpose.msra.mxu0 0.0
        %487 = vmatpush.xpose.msra.mxu0 0.0
        %488 = vmatpush.xpose.msra.mxu0 0.0
        %489 = vmatpush.xpose.msra.mxu0 0.0
        %490 = vmatpush.xpose.msra.mxu0 0.0
        %491 = vmatpush.xpose.msra.mxu0 0.0
        %492 = vmatpush.xpose.msra.mxu0 0.0
        %493 = vmatpush.xpose.msra.mxu0 0.0
        %494 = vmatpush.xpose.msra.mxu0 0.0
        %495 = vmatpush.xpose.msra.mxu0 0.0
        %496 = vmatpush.xpose.msra.mxu0 %v479
        %497 = vmatmul.f32.gmra.mxu0 %v477
        %v498 = vpop.f32.mrf.mxu0
        %v499 = vadd.f32 0.0, %v498
        %500 = vdwg.mxu0
        %v501 = vsel %vm435, %v499, -inf
        %502 = vmax.xlane.f32.xlu0 %v501
        %v503 = vpop.xlane.xlu0 %502
        %v504 = vsub.f32 %v499, %v503
        %v505 = vmul.f32 %v504, 1.442695
        %v506 = vpow.pop %v505
        %v507 = vsel %vm435, %v506, 0.0
        %508 = vadd.xlane.f32.xlu0 %v507
        %v509 = vpop.xlane.xlu0 %508
        %v510 = vrcp.pop %v509
        %v511 = vmul.f32 %v506, %v510
        %512 = vrot.lane.b32.xlu0 %v406, 92
        %v513 = vpop.permute.xlu0 %512
        %v516 = vsel %vm435, %v511, 0
        %518 = vmatpush.msra.mxu0 0.0
        %519 = vmatpush.msra.mxu0 0.0
        %520 = vmatpush.msra.mxu0 0.0
        %521 = vmatpush.msra.mxu0 0.0
        %522 = vmatpush.msra.mxu0 0.0
        %523 = vmatpush.msra.mxu0 0.0
        %524 = vmatpush.msra.mxu0 0.0
        %525 = vmatpush.msra.mxu0 0.0
        %526 = vmatpush.msra.mxu0 0.0
        %527 = vmatpush.msra.mxu0 0.0
        %528 = vmatpush.msra.mxu0 0.0
        %529 = vmatpush.msra.mxu0 0.0
        %530 = vmatpush.msra.mxu0 0.0
        %531 = vmatpush.msra.mxu0 0.0
        %532 = vmatpush.msra.mxu0 0.0
        %533 = vmatpush.msra.mxu0 %v513
        %534 = vmatmul.f32.gmra.mxu0 %v516
        %v535 = vpop.f32.mrf.mxu0
        %v536 = vadd.f32 0.0, %v535
        %537 = vdwg.mxu0
        %538 = vrot.lane.b32.xlu0 %v374, 120
        %v539 = vpop.permute.xlu0 %538
        %540 = vrot.lane.b32.xlu0 %v406, 120
        %v541 = vpop.permute.xlu0 %540
        %v542 = vsel %vm408, %v539, 0
        %v544 = vsel %vm408, %v541, 0
        %546 = vmatpush.xpose.msra.mxu0 0.0
        %547 = vmatpush.xpose.msra.mxu0 0.0
        %548 = vmatpush.xpose.msra.mxu0 0.0
        %549 = vmatpush.xpose.msra.mxu0 0.0
        %550 = vmatpush.xpose.msra.mxu0 0.0
        %551 = vmatpush.xpose.msra.mxu0 0.0
        %552 = vmatpush.xpose.msra.mxu0 0.0
        %553 = vmatpush.xpose.msra.mxu0 0.0
        %554 = vmatpush.xpose.msra.mxu0 0.0
        %555 = vmatpush.xpose.msra.mxu0 0.0
        %556 = vmatpush.xpose.msra.mxu0 0.0
        %557 = vmatpush.xpose.msra.mxu0 0.0
        %558 = vmatpush.xpose.msra.mxu0 0.0
        %559 = vmatpush.xpose.msra.mxu0 0.0
        %560 = vmatpush.xpose.msra.mxu0 0.0
        %561 = vmatpush.xpose.msra.mxu0 %v544
        %562 = vmatmul.f32.gmra.mxu0 %v542
        %v563 = vpop.f32.mrf.mxu0
        %v564 = vadd.f32 0.0, %v563
        %565 = vdwg.mxu0
        %v566 = vsel %vm435, %v564, -inf
        %567 = vmax.xlane.f32.xlu0 %v566
        %v568 = vpop.xlane.xlu0 %567
        %v569 = vsub.f32 %v564, %v568
        %v570 = vmul.f32 %v569, 1.442695
        %v571 = vpow.pop %v570
        %v572 = vsel %vm435, %v571, 0.0
        %573 = vadd.xlane.f32.xlu0 %v572
        %v574 = vpop.xlane.xlu0 %573
        %v575 = vrcp.pop %v574
        %v576 = vmul.f32 %v571, %v575
        %577 = vrot.lane.b32.xlu0 %v406, 88
        %v578 = vpop.permute.xlu0 %577
        %v581 = vsel %vm435, %v576, 0
        %583 = vmatpush.msra.mxu0 0.0
        %584 = vmatpush.msra.mxu0 0.0
        %585 = vmatpush.msra.mxu0 0.0
        %586 = vmatpush.msra.mxu0 0.0
        %587 = vmatpush.msra.mxu0 0.0
        %588 = vmatpush.msra.mxu0 0.0
        %589 = vmatpush.msra.mxu0 0.0
        %590 = vmatpush.msra.mxu0 0.0
        %591 = vmatpush.msra.mxu0 0.0
        %592 = vmatpush.msra.mxu0 0.0
        %593 = vmatpush.msra.mxu0 0.0
        %594 = vmatpush.msra.mxu0 0.0
        %595 = vmatpush.msra.mxu0 0.0
        %596 = vmatpush.msra.mxu0 0.0
        %597 = vmatpush.msra.mxu0 0.0
        %598 = vmatpush.msra.mxu0 %v578
        %599 = vmatmul.f32.gmra.mxu0 %v581
        %v600 = vpop.f32.mrf.mxu0
        %v601 = vadd.f32 0.0, %v600
        %602 = vdwg.mxu0
        %603 = vrot.lane.b32.xlu0 %v374, 116
        %v604 = vpop.permute.xlu0 %603
        %605 = vrot.lane.b32.xlu0 %v406, 116
        %v606 = vpop.permute.xlu0 %605
        %v607 = vsel %vm408, %v604, 0
        %v609 = vsel %vm408, %v606, 0
        %611 = vmatpush.xpose.msra.mxu0 0.0
        %612 = vmatpush.xpose.msra.mxu0 0.0
        %613 = vmatpush.xpose.msra.mxu0 0.0
        %614 = vmatpush.xpose.msra.mxu0 0.0
        %615 = vmatpush.xpose.msra.mxu0 0.0
        %616 = vmatpush.xpose.msra.mxu0 0.0
        %617 = vmatpush.xpose.msra.mxu0 0.0
        %618 = vmatpush.xpose.msra.mxu0 0.0
        %619 = vmatpush.xpose.msra.mxu0 0.0
        %620 = vmatpush.xpose.msra.mxu0 0.0
        %621 = vmatpush.xpose.msra.mxu0 0.0
        %622 = vmatpush.xpose.msra.mxu0 0.0
        %623 = vmatpush.xpose.msra.mxu0 0.0
        %624 = vmatpush.xpose.msra.mxu0 0.0
        %625 = vmatpush.xpose.msra.mxu0 0.0
        %626 = vmatpush.xpose.msra.mxu0 %v609
        %627 = vmatmul.f32.gmra.mxu0 %v607
        %v628 = vpop.f32.mrf.mxu0
        %v629 = vadd.f32 0.0, %v628
        %630 = vdwg.mxu0
        %v631 = vsel %vm435, %v629, -inf
        %632 = vmax.xlane.f32.xlu0 %v631
        %v633 = vpop.xlane.xlu0 %632
        %v634 = vsub.f32 %v629, %v633
        %v635 = vmul.f32 %v634, 1.442695
        %v636 = vpow.pop %v635
        %v637 = vsel %vm435, %v636, 0.0
        %638 = vadd.xlane.f32.xlu0 %v637
        %v639 = vpop.xlane.xlu0 %638
        %v640 = vrcp.pop %v639
        %v641 = vmul.f32 %v636, %v640
        %642 = vrot.lane.b32.xlu0 %v406, 84
        %v643 = vpop.permute.xlu0 %642
        %v646 = vsel %vm435, %v641, 0
        %648 = vmatpush.msra.mxu0 0.0
        %649 = vmatpush.msra.mxu0 0.0
        %650 = vmatpush.msra.mxu0 0.0
        %651 = vmatpush.msra.mxu0 0.0
        %652 = vmatpush.msra.mxu0 0.0
        %653 = vmatpush.msra.mxu0 0.0
        %654 = vmatpush.msra.mxu0 0.0
        %655 = vmatpush.msra.mxu0 0.0
        %656 = vmatpush.msra.mxu0 0.0
        %657 = vmatpush.msra.mxu0 0.0
        %658 = vmatpush.msra.mxu0 0.0
        %659 = vmatpush.msra.mxu0 0.0
        %660 = vmatpush.msra.mxu0 0.0
        %661 = vmatpush.msra.mxu0 0.0
        %662 = vmatpush.msra.mxu0 0.0
        %663 = vmatpush.msra.mxu0 %v643
        %664 = vmatmul.f32.gmra.mxu0 %v646
        %v665 = vpop.f32.mrf.mxu0
        %v666 = vadd.f32 0.0, %v665
        %667 = vdwg.mxu0
        %668 = vrot.lane.b32.xlu0 %v374, 112
        %v669 = vpop.permute.xlu0 %668
        %670 = vrot.lane.b32.xlu0 %v406, 112
        %v671 = vpop.permute.xlu0 %670
        %v672 = vsel %vm408, %v669, 0
        %v674 = vsel %vm408, %v671, 0
        %676 = vmatpush.xpose.msra.mxu0 0.0
        %677 = vmatpush.xpose.msra.mxu0 0.0
        %678 = vmatpush.xpose.msra.mxu0 0.0
        %679 = vmatpush.xpose.msra.mxu0 0.0
        %680 = vmatpush.xpose.msra.mxu0 0.0
        %681 = vmatpush.xpose.msra.mxu0 0.0
        %682 = vmatpush.xpose.msra.mxu0 0.0
        %683 = vmatpush.xpose.msra.mxu0 0.0
        %684 = vmatpush.xpose.msra.mxu0 0.0
        %685 = vmatpush.xpose.msra.mxu0 0.0
        %686 = vmatpush.xpose.msra.mxu0 0.0
        %687 = vmatpush.xpose.msra.mxu0 0.0
        %688 = vmatpush.xpose.msra.mxu0 0.0
        %689 = vmatpush.xpose.msra.mxu0 0.0
        %690 = vmatpush.xpose.msra.mxu0 0.0
        %691 = vmatpush.xpose.msra.mxu0 %v674
        %692 = vmatmul.f32.gmra.mxu0 %v672
        %v693 = vpop.f32.mrf.mxu0
        %v694 = vadd.f32 0.0, %v693
        %695 = vdwg.mxu0
        %v696 = vsel %vm435, %v694, -inf
        %697 = vmax.xlane.f32.xlu0 %v696
        %v698 = vpop.xlane.xlu0 %697
        %v699 = vsub.f32 %v694, %v698
        %v700 = vmul.f32 %v699, 1.442695
        %v701 = vpow.pop %v700
        %v702 = vsel %vm435, %v701, 0.0
        %703 = vadd.xlane.f32.xlu0 %v702
        %v704 = vpop.xlane.xlu0 %703
        %v705 = vrcp.pop %v704
        %v706 = vmul.f32 %v701, %v705
        %707 = vrot.lane.b32.xlu0 %v406, 80
        %v708 = vpop.permute.xlu0 %707
        %v711 = vsel %vm435, %v706, 0
        %713 = vmatpush.msra.mxu0 0.0
        %714 = vmatpush.msra.mxu0 0.0
        %715 = vmatpush.msra.mxu0 0.0
        %716 = vmatpush.msra.mxu0 0.0
        %717 = vmatpush.msra.mxu0 0.0
        %718 = vmatpush.msra.mxu0 0.0
        %719 = vmatpush.msra.mxu0 0.0
        %720 = vmatpush.msra.mxu0 0.0
        %721 = vmatpush.msra.mxu0 0.0
        %722 = vmatpush.msra.mxu0 0.0
        %723 = vmatpush.msra.mxu0 0.0
        %724 = vmatpush.msra.mxu0 0.0
        %725 = vmatpush.msra.mxu0 0.0
        %726 = vmatpush.msra.mxu0 0.0
        %727 = vmatpush.msra.mxu0 0.0
        %728 = vmatpush.msra.mxu0 %v708
        %729 = vmatmul.f32.gmra.mxu0 %v711
        %v730 = vpop.f32.mrf.mxu0
        %v731 = vadd.f32 0.0, %v730
        %732 = vdwg.mxu0
        %733 = vrot.lane.b32.xlu0 %v374, 108
        %v734 = vpop.permute.xlu0 %733
        %735 = vrot.lane.b32.xlu0 %v406, 108
        %v736 = vpop.permute.xlu0 %735
        %v737 = vsel %vm408, %v734, 0
        %v739 = vsel %vm408, %v736, 0
        %741 = vmatpush.xpose.msra.mxu0 0.0
        %742 = vmatpush.xpose.msra.mxu0 0.0
        %743 = vmatpush.xpose.msra.mxu0 0.0
        %744 = vmatpush.xpose.msra.mxu0 0.0
        %745 = vmatpush.xpose.msra.mxu0 0.0
        %746 = vmatpush.xpose.msra.mxu0 0.0
        %747 = vmatpush.xpose.msra.mxu0 0.0
        %748 = vmatpush.xpose.msra.mxu0 0.0
        %749 = vmatpush.xpose.msra.mxu0 0.0
        %750 = vmatpush.xpose.msra.mxu0 0.0
        %751 = vmatpush.xpose.msra.mxu0 0.0
        %752 = vmatpush.xpose.msra.mxu0 0.0
        %753 = vmatpush.xpose.msra.mxu0 0.0
        %754 = vmatpush.xpose.msra.mxu0 0.0
        %755 = vmatpush.xpose.msra.mxu0 0.0
        %756 = vmatpush.xpose.msra.mxu0 %v739
        %757 = vmatmul.f32.gmra.mxu0 %v737
        %v758 = vpop.f32.mrf.mxu0
        %v759 = vadd.f32 0.0, %v758
        %760 = vdwg.mxu0
        %v761 = vsel %vm435, %v759, -inf
        %762 = vmax.xlane.f32.xlu0 %v761
        %v763 = vpop.xlane.xlu0 %762
        %v764 = vsub.f32 %v759, %v763
        %v765 = vmul.f32 %v764, 1.442695
        %v766 = vpow.pop %v765
        %v767 = vsel %vm435, %v766, 0.0
        %768 = vadd.xlane.f32.xlu0 %v767
        %v769 = vpop.xlane.xlu0 %768
        %v770 = vrcp.pop %v769
        %v771 = vmul.f32 %v766, %v770
        %772 = vrot.lane.b32.xlu0 %v406, 76
        %v773 = vpop.permute.xlu0 %772
        %v776 = vsel %vm435, %v771, 0
        %778 = vmatpush.msra.mxu0 0.0
        %779 = vmatpush.msra.mxu0 0.0
        %780 = vmatpush.msra.mxu0 0.0
        %781 = vmatpush.msra.mxu0 0.0
        %782 = vmatpush.msra.mxu0 0.0
        %783 = vmatpush.msra.mxu0 0.0
        %784 = vmatpush.msra.mxu0 0.0
        %785 = vmatpush.msra.mxu0 0.0
        %786 = vmatpush.msra.mxu0 0.0
        %787 = vmatpush.msra.mxu0 0.0
        %788 = vmatpush.msra.mxu0 0.0
        %789 = vmatpush.msra.mxu0 0.0
        %790 = vmatpush.msra.mxu0 0.0
        %791 = vmatpush.msra.mxu0 0.0
        %792 = vmatpush.msra.mxu0 0.0
        %793 = vmatpush.msra.mxu0 %v773
        %794 = vmatmul.f32.gmra.mxu0 %v776
        %v795 = vpop.f32.mrf.mxu0
        %v796 = vadd.f32 0.0, %v795
        %797 = vdwg.mxu0
        %798 = vrot.lane.b32.xlu0 %v374, 104
        %v799 = vpop.permute.xlu0 %798
        %800 = vrot.lane.b32.xlu0 %v406, 104
        %v801 = vpop.permute.xlu0 %800
        %v802 = vsel %vm408, %v799, 0
        %v804 = vsel %vm408, %v801, 0
        %806 = vmatpush.xpose.msra.mxu0 0.0
        %807 = vmatpush.xpose.msra.mxu0 0.0
        %808 = vmatpush.xpose.msra.mxu0 0.0
        %809 = vmatpush.xpose.msra.mxu0 0.0
        %810 = vmatpush.xpose.msra.mxu0 0.0
        %811 = vmatpush.xpose.msra.mxu0 0.0
        %812 = vmatpush.xpose.msra.mxu0 0.0
        %813 = vmatpush.xpose.msra.mxu0 0.0
        %814 = vmatpush.xpose.msra.mxu0 0.0
        %815 = vmatpush.xpose.msra.mxu0 0.0
        %816 = vmatpush.xpose.msra.mxu0 0.0
        %817 = vmatpush.xpose.msra.mxu0 0.0
        %818 = vmatpush.xpose.msra.mxu0 0.0
        %819 = vmatpush.xpose.msra.mxu0 0.0
        %820 = vmatpush.xpose.msra.mxu0 0.0
        %821 = vmatpush.xpose.msra.mxu0 %v804
        %822 = vmatmul.f32.gmra.mxu0 %v802
        %v823 = vpop.f32.mrf.mxu0
        %v824 = vadd.f32 0.0, %v823
        %825 = vdwg.mxu0
        %v826 = vsel %vm435, %v824, -inf
        %827 = vmax.xlane.f32.xlu0 %v826
        %v828 = vpop.xlane.xlu0 %827
        %v829 = vsub.f32 %v824, %v828
        %v830 = vmul.f32 %v829, 1.442695
        %v831 = vpow.pop %v830
        %v832 = vsel %vm435, %v831, 0.0
        %833 = vadd.xlane.f32.xlu0 %v832
        %v834 = vpop.xlane.xlu0 %833
        %v835 = vrcp.pop %v834
        %v836 = vmul.f32 %v831, %v835
        %837 = vrot.lane.b32.xlu0 %v406, 72
        %v838 = vpop.permute.xlu0 %837
        %v841 = vsel %vm435, %v836, 0
        %843 = vmatpush.msra.mxu0 0.0
        %844 = vmatpush.msra.mxu0 0.0
        %845 = vmatpush.msra.mxu0 0.0
        %846 = vmatpush.msra.mxu0 0.0
        %847 = vmatpush.msra.mxu0 0.0
        %848 = vmatpush.msra.mxu0 0.0
        %849 = vmatpush.msra.mxu0 0.0
        %850 = vmatpush.msra.mxu0 0.0
        %851 = vmatpush.msra.mxu0 0.0
        %852 = vmatpush.msra.mxu0 0.0
        %853 = vmatpush.msra.mxu0 0.0
        %854 = vmatpush.msra.mxu0 0.0
        %855 = vmatpush.msra.mxu0 0.0
        %856 = vmatpush.msra.mxu0 0.0
        %857 = vmatpush.msra.mxu0 0.0
        %858 = vmatpush.msra.mxu0 %v838
        %859 = vmatmul.f32.gmra.mxu0 %v841
        %v860 = vpop.f32.mrf.mxu0
        %v861 = vadd.f32 0.0, %v860
        %862 = vdwg.mxu0
        %863 = vrot.lane.b32.xlu0 %v374, 100
        %v864 = vpop.permute.xlu0 %863
        %865 = vrot.lane.b32.xlu0 %v406, 100
        %v866 = vpop.permute.xlu0 %865
        %v867 = vsel %vm408, %v864, 0
        %v869 = vsel %vm408, %v866, 0
        %871 = vmatpush.xpose.msra.mxu0 0.0
        %872 = vmatpush.xpose.msra.mxu0 0.0
        %873 = vmatpush.xpose.msra.mxu0 0.0
        %874 = vmatpush.xpose.msra.mxu0 0.0
        %875 = vmatpush.xpose.msra.mxu0 0.0
        %876 = vmatpush.xpose.msra.mxu0 0.0
        %877 = vmatpush.xpose.msra.mxu0 0.0
        %878 = vmatpush.xpose.msra.mxu0 0.0
        %879 = vmatpush.xpose.msra.mxu0 0.0
        %880 = vmatpush.xpose.msra.mxu0 0.0
        %881 = vmatpush.xpose.msra.mxu0 0.0
        %882 = vmatpush.xpose.msra.mxu0 0.0
        %883 = vmatpush.xpose.msra.mxu0 0.0
        %884 = vmatpush.xpose.msra.mxu0 0.0
        %885 = vmatpush.xpose.msra.mxu0 0.0
        %886 = vmatpush.xpose.msra.mxu0 %v869
        %887 = vmatmul.f32.gmra.mxu0 %v867
        %v888 = vpop.f32.mrf.mxu0
        %v889 = vadd.f32 0.0, %v888
        %890 = vdwg.mxu0
        %v891 = vsel %vm435, %v889, -inf
        %892 = vmax.xlane.f32.xlu0 %v891
        %v893 = vpop.xlane.xlu0 %892
        %v894 = vsub.f32 %v889, %v893
        %v895 = vmul.f32 %v894, 1.442695
        %v896 = vpow.pop %v895
        %v897 = vsel %vm435, %v896, 0.0
        %898 = vadd.xlane.f32.xlu0 %v897
        %v899 = vpop.xlane.xlu0 %898
        %v900 = vrcp.pop %v899
        %v901 = vmul.f32 %v896, %v900
        %902 = vrot.lane.b32.xlu0 %v406, 68
        %v903 = vpop.permute.xlu0 %902
        %v906 = vsel %vm435, %v901, 0
        %908 = vmatpush.msra.mxu0 0.0
        %909 = vmatpush.msra.mxu0 0.0
        %910 = vmatpush.msra.mxu0 0.0
        %911 = vmatpush.msra.mxu0 0.0
        %912 = vmatpush.msra.mxu0 0.0
        %913 = vmatpush.msra.mxu0 0.0
        %914 = vmatpush.msra.mxu0 0.0
        %915 = vmatpush.msra.mxu0 0.0
        %916 = vmatpush.msra.mxu0 0.0
        %917 = vmatpush.msra.mxu0 0.0
        %918 = vmatpush.msra.mxu0 0.0
        %919 = vmatpush.msra.mxu0 0.0
        %920 = vmatpush.msra.mxu0 0.0
        %921 = vmatpush.msra.mxu0 0.0
        %922 = vmatpush.msra.mxu0 0.0
        %923 = vmatpush.msra.mxu0 %v903
        %924 = vmatmul.f32.gmra.mxu0 %v906
        %v925 = vpop.f32.mrf.mxu0
        %v926 = vadd.f32 0.0, %v925
        %927 = vdwg.mxu0
        %929 = vrot.lane.b32.xlu0 %v536, 4
        %v930 = vpop.permute.xlu0 %929
        %933 = vrot.lane.b32.xlu0 %v601, 8
        %v934 = vpop.permute.xlu0 %933
        %937 = vrot.lane.b32.xlu0 %v666, 12
        %v938 = vpop.permute.xlu0 %937
        %941 = vrot.lane.b32.xlu0 %v731, 16
        %v942 = vpop.permute.xlu0 %941
        %945 = vrot.lane.b32.xlu0 %v796, 20
        %v946 = vpop.permute.xlu0 %945
        %949 = vrot.lane.b32.xlu0 %v861, 24
        %v950 = vpop.permute.xlu0 %949
        %953 = vrot.lane.b32.xlu0 %v926, 28
        %v954 = vpop.permute.xlu0 %953
        %v956 = vsel %vm408, %v471, %v930
        %v957 = vsel %vm435, %v956, %v934
        %vm958 = vcmask 97280
        %v959 = vsel %vm958, %v957, %v938
        %vm960 = vcmask 130048
        %v961 = vsel %vm960, %v959, %v942
        %vm962 = vcmask 162816
        %v963 = vsel %vm962, %v961, %v946
        %vm964 = vcmask 195584
        %v965 = vsel %vm964, %v963, %v950
        %vm966 = vcmask 228352
        %v967 = vsel %vm966, %v965, %v954
        %v968 = vld [vmem:[%s6] sm:$0xff]
        %v969 = vld [vmem:[%s6 + $0x8] sm:$0xff]
        %v970 = vld [vmem:[%s6 + $0x10] sm:$0xff]
        %v971 = vld [vmem:[%s6 + $0x18] sm:$0xff]
        %v972 = vld [vmem:[%s7] sm:$0x1]
        %v974 = vperm.slane %v972, 0
        %v977 = vsel %vm352, %v967, 0
        %979 = vmatpush.msra.mxu0 0.0
        %980 = vmatpush.msra.mxu0 0.0
        %981 = vmatpush.msra.mxu0 0.0
        %982 = vmatpush.msra.mxu0 0.0
        %983 = vmatpush.msra.mxu0 0.0
        %984 = vmatpush.msra.mxu0 0.0
        %985 = vmatpush.msra.mxu0 0.0
        %986 = vmatpush.msra.mxu0 0.0
        %987 = vmatpush.msra.mxu0 0.0
        %988 = vmatpush.msra.mxu0 0.0
        %989 = vmatpush.msra.mxu0 0.0
        %990 = vmatpush.msra.mxu0 0.0
        %991 = vmatpush.msra.mxu0 %v971
        %992 = vmatpush.msra.mxu0 %v970
        %993 = vmatpush.msra.mxu0 %v969
        %994 = vmatpush.msra.mxu0 %v968
        %995 = vmatmul.f32.gmra.mxu0 %v977
        %v996 = vpop.f32.mrf.mxu0
        %v997 = vadd.f32 %v974, %v996
        %998 = vdwg.mxu0
        %999 = vst.msk [vmem:[%s331] sm:$0xff] %vm352, %v997
        %s1000 = sand.u32 %s224, 1
        %s1001 = scalar_lea.sflag [#allocation3], %s1000
        %s1002 = sand.u32 %s224, 1
        %s1003 = smul.addr %s1002, 8
        %s1004 = scalar_lea.vmem [#allocation2], %s1003
        // Predicated region
        $region53: #{simple_attention.1} parent=51 // pred_check
          %p1005 = pneg %p234
        $region54: #{simple_attention.1} parent=51 // pred_check_branch
          %1007 = sbr.rel (%p1005) target = $region56
        $region55: #{simple_attention.1} parent=51 // pred_region
          %1009 = vsyncadd %s1001, 0
          %s1010 = sadd.s32 %s27, %s26
          %s1011 = smul.addr %s1010, 8
          %s1012 = scalar_lea.hbm %s8, %s1011
          %s1014 = sshll.u32 %s1004, 4
          %s1015 = int_to_ptr.vmem [resolvable:$true] %s1014
          %s1016 = sshll.u32 %s1012, 4
          %s1017 = int_to_ptr.hbm [resolvable:$true] %s1016
          %1019 = dma.vmem_to_hbm [thread:$0]  %s1015, 128, %s1017, %s1001
        $region56: #{simple_attention.1} parent=51 // pred_fallthru
          _
      $region52: #{simple_attention.1} parent=5 // pred_fallthru
        _
      %p1020 = scmp.le.s32.totalorder 2, %s17
      // Predicated region
      $region57: #{simple_attention.1} parent=5 // pred_check
        %p1021 = pneg %p1020
      $region58: #{simple_attention.1} parent=5 // pred_check_branch
        %1023 = sbr.rel (%p1021) target = $region60
      $region59: #{simple_attention.1} parent=5 // pred_region
        %s1024 = ssub.s32 %s17, 2
        // Predicated region
        $region61: #{simple_attention.1} parent=59 // pred_check
          %p1025 = pneg %p240
        $region62: #{simple_attention.1} parent=59 // pred_check_branch
          %1027 = sbr.rel (%p1025) target = $region64
        $region63: #{simple_attention.1} parent=59 // pred_region
          %s1028 = sand.u32 %s225, 1
          %s1029 = scalar_lea.sflag [#allocation3], %s1028
          %s1030 = sand.u32 %s225, 1
          %s1031 = smul.addr %s1030, 8
          %s1032 = scalar_lea.vmem [#allocation2], %s1031
          %1034 = dma.done %s1029, 128
        $region64: #{simple_attention.1} parent=59 // pred_fallthru
          _
      $region60: #{simple_attention.1} parent=5 // pred_fallthru
        _
    $region6: #{simple_attention.1} parent=1 // loop_footer
      %s21 = sadd.s32 1, %s17
    $region7: #{simple_attention.1} parent=1 // loop_footer_branch
      %16 = sbr.rel target = $region3
    $region8: #{simple_attention.1} parent=1 // loop_exit
      _
    %1035 = vsyncpa [#allocation3], 1
    %s1036 = scalar_lea.sflag [#allocation3], 1
    %1037 = vsyncpa %s1036, 1

</llo_original>
